<compile_context>
chip_gen: v6e
topology: v6e:2x2x1
jax: 0.10.0
libtpu: 0.0.40
codegen_flags: <defaults>
</compile_context>

<pallas_src>
import functools

import jax
import jax.numpy as jnp
from jax.experimental import pallas as pl
from jax.experimental.pallas import tpu as pltpu


# ----------------------------------------------------------------------------
# Generation-aware VMEM budget
# ----------------------------------------------------------------------------
@functools.lru_cache(maxsize=None)
def _vmem_limit_bytes():
    try:
        cap = int(pltpu.get_tpu_info().vmem_capacity_bytes)
        # leave headroom for Mosaic internal scratch; cap at 100 MiB on 128 MiB parts.
        return min((cap * 3) // 4, 100 * 1024 * 1024)
    except Exception:
        return 32 * 1024 * 1024  # conservative fallback, works on every generation


def _mosaic_params(dims):
    return pltpu.CompilerParams(dimension_semantics=dims,
                                vmem_limit_bytes=_vmem_limit_bytes())


def _pick_tile(dim, target, min_tile=128):
    """Largest power-of-two-scaled tile <= target that divides dim; full extent for
    small dims.  Realistic transformer dims are multiples of 128/256 so the target is
    used; tiny test dims use the full extent."""
    if dim <= target:
        return dim
    t = target
    while t >= min_tile:
        if dim % t == 0:
            return t
        t //= 2
    # TODO(synk): masked/padded remainder tiles for awkward (non power-of-two-friendly) dims.
    return dim


# ----------------------------------------------------------------------------
# Kernel 1: tiled linear projection  y = x @ Wt + b
#   x: (N, Din), Wt: (Din, Dout) (pre-transposed at init), b: (1, Dout)
# ----------------------------------------------------------------------------
def _linear_kernel_noacc(x_ref, w_ref, b_ref, o_ref):
    # Whole Din in one tile: no reduction axis, no accumulator traffic.
    acc = jnp.dot(x_ref[...], w_ref[...], preferred_element_type=jnp.float32)
    o_ref[...] = (acc + b_ref[...].astype(jnp.float32)).astype(o_ref.dtype)


def _linear_kernel_acc(x_ref, w_ref, b_ref, o_ref, acc_ref):
    k = pl.program_id(2)

    @pl.when(k == 0)
    def _():
        acc_ref[...] = jnp.zeros_like(acc_ref)

    acc_ref[...] += jnp.dot(x_ref[...], w_ref[...],
                            preferred_element_type=jnp.float32)

    @pl.when(k == pl.num_programs(2) - 1)
    def _():
        o_ref[...] = (acc_ref[...] + b_ref[...].astype(jnp.float32)).astype(o_ref.dtype)


def linear(x, wt, b, *, tm=256, tn=512, tk=512):
    """x: (N, Din), wt: (Din, Dout), b: (1, Dout) -> (N, Dout)."""
    n, din = x.shape
    dout = wt.shape[1]
    tm = _pick_tile(n, tm)
    tn = _pick_tile(dout, tn)
    tk = din if din <= 2048 else _pick_tile(din, tk)
    out_shape = jax.ShapeDtypeStruct((n, dout), x.dtype)

    if tk == din:
        # 2-D grid, no accumulator.
        return pl.pallas_call(
            _linear_kernel_noacc,
            out_shape=out_shape,
            grid_spec=pltpu.PrefetchScalarGridSpec(
                num_scalar_prefetch=0,
                grid=(n // tm, dout // tn),
                in_specs=[
                    pl.BlockSpec((tm, din), lambda i, j: (i, 0)),
                    pl.BlockSpec((din, tn), lambda i, j: (0, j)),
                    pl.BlockSpec((1, tn), lambda i, j: (0, j)),
                ],
                out_specs=pl.BlockSpec((tm, tn), lambda i, j: (i, j)),
            ),
            compiler_params=_mosaic_params(("parallel", "parallel")),
        )(x, wt, b)

    # 3-D grid with K reduction last and fp32 accumulator.
    return pl.pallas_call(
        _linear_kernel_acc,
        out_shape=out_shape,
        grid_spec=pltpu.PrefetchScalarGridSpec(
            num_scalar_prefetch=0,
            grid=(n // tm, dout // tn, din // tk),
            in_specs=[
                pl.BlockSpec((tm, tk), lambda i, j, k: (i, k)),
                pl.BlockSpec((tk, tn), lambda i, j, k: (k, j)),
                pl.BlockSpec((1, tn), lambda i, j, k: (0, j)),
            ],
            out_specs=pl.BlockSpec((tm, tn), lambda i, j, k: (i, j)),
            scratch_shapes=[pltpu.VMEM((tm, tn), jnp.float32)],
        ),
        compiler_params=_mosaic_params(("parallel", "parallel", "arbitrary")),
    )(x, wt, b)


# ----------------------------------------------------------------------------
# Kernel 2a: flash-style attention, no weights output (need_weights=False).
#   grid = (B, T_tiles, S_tiles), all heads per step, online softmax.
#   q/k/v: (B, H, T|S, Dh).  Scaling already folded into q.
# ----------------------------------------------------------------------------
def _flash_kernel(q_ref, k_ref, v_ref, o_ref, m_sc, l_sc, acc_sc):
    si = pl.program_id(2)

    @pl.when(si == 0)
    def _():
        m_sc[...] = jnp.full_like(m_sc, -jnp.inf)
        l_sc[...] = jnp.zeros_like(l_sc)
        acc_sc[...] = jnp.zeros_like(acc_sc)

    q = q_ref[0]                                       # (H, tq, Dh)
    k = k_ref[0]                                       # (H, ts, Dh)
    v = v_ref[0]                                       # (H, ts, Dh)

    s = jnp.einsum('hqd,hkd->hqk', q, k,
                   preferred_element_type=jnp.float32)           # (H, tq, ts) fp32
    m_prev = m_sc[...]
    m_new = jnp.maximum(m_prev, s.max(axis=-1, keepdims=True))
    alpha = jnp.exp(m_prev - m_new)
    p = jnp.exp(s - m_new)
    l_sc[...] = alpha * l_sc[...] + p.sum(axis=-1, keepdims=True)
    acc_sc[...] = alpha * acc_sc[...] + jnp.einsum(
        'hqk,hkd->hqd', p.astype(v.dtype), v, preferred_element_type=jnp.float32)
    m_sc[...] = m_new

    @pl.when(si == pl.num_programs(2) - 1)
    def _():
        o_ref[0] = (acc_sc[...] * pl.reciprocal(l_sc[...], approx=True)).astype(o_ref.dtype)


def flash_attention(q, k, v, *, tq=256, ts=512):
    b, h, t, dh = q.shape
    s = k.shape[2]
    tq = _pick_tile(t, tq)
    ts = _pick_tile(s, ts)
    grid = (b, t // tq, s // ts)
    # TODO(synk): fold the wrapper-side layout transposes into these BlockSpecs and
    # consider pl.Buffered(1) on k/v when S fits in a single tile.
    return pl.pallas_call(
        _flash_kernel,
        out_shape=jax.ShapeDtypeStruct((b, h, t, dh), q.dtype),
        grid_spec=pltpu.PrefetchScalarGridSpec(
            num_scalar_prefetch=0,
            grid=grid,
            in_specs=[
                pl.BlockSpec((1, h, tq, dh), lambda bi, ti, si: (bi, 0, ti, 0)),
                pl.BlockSpec((1, h, ts, dh), lambda bi, ti, si: (bi, 0, si, 0)),
                pl.BlockSpec((1, h, ts, dh), lambda bi, ti, si: (bi, 0, si, 0)),
            ],
            out_specs=pl.BlockSpec((1, h, tq, dh), lambda bi, ti, si: (bi, 0, ti, 0)),
            scratch_shapes=[
                pltpu.VMEM((h, tq, 1), jnp.float32),
                pltpu.VMEM((h, tq, 1), jnp.float32),
                pltpu.VMEM((h, tq, dh), jnp.float32),
            ],
        ),
        compiler_params=_mosaic_params(("parallel", "parallel", "arbitrary")),
    )(q, k, v)


# ----------------------------------------------------------------------------
# Kernel 2b: attention that also returns softmax weights (need_weights=True).
#   grid = (B, T_tiles, H) — one head per step, H innermost ("arbitrary").
#   mean_heads=True : head-mean accumulated in fp32 scratch, written once per tile
#                     into a (B, T, S) output.
#   mean_heads=False: per-head weights written directly into (H, B, T, S) (no
#                     wrapper-side transpose of the largest tensor).
# ----------------------------------------------------------------------------
def _attn_weights_kernel(q_ref, k_ref, v_ref, o_ref, w_ref, *scratch,
                         mean_heads):
    hi = pl.program_id(2)
    q = q_ref[0, 0]                                    # (tq, Dh)
    k = k_ref[0, 0]                                    # (S, Dh)
    v = v_ref[0, 0]                                    # (S, Dh)

    s = jnp.einsum('qd,kd->qk', q, k,
                   preferred_element_type=jnp.float32)            # (tq, S) fp32
    s = s - jnp.max(s, axis=-1, keepdims=True)
    p = jnp.exp(s)
    probs = p * pl.reciprocal(jnp.sum(p, axis=-1, keepdims=True))  # exact (returned)

    attn = jnp.dot(probs.astype(v.dtype), v,
                   preferred_element_type=jnp.float32)             # (tq, Dh)
    o_ref[0, 0] = attn.astype(o_ref.dtype)

    if mean_heads:
        wacc_ref = scratch[0]
        nh = pl.num_programs(2)

        @pl.when(hi == 0)
        def _():
            wacc_ref[...] = jnp.zeros_like(wacc_ref)

        wacc_ref[...] += probs

        @pl.when(hi == nh - 1)
        def _():
            w_ref[0] = (wacc_ref[...] * (1.0 / nh)).astype(w_ref.dtype)
    else:
        w_ref[0, 0] = probs.astype(w_ref.dtype)


def attention_with_weights(q, k, v, *, mean_heads, out_dtype, tq=256):
    b, h, t, dh = q.shape
    s = k.shape[2]
    tq = _pick_tile(t, tq)
    grid = (b, t // tq, h)

    if mean_heads:
        w_shape = jax.ShapeDtypeStruct((b, t, s), out_dtype)
        w_spec = pl.BlockSpec((1, tq, s), lambda bi, ti, hi: (bi, ti, 0))
        scratch = [pltpu.VMEM((tq, s), jnp.float32)]
    else:
        w_shape = jax.ShapeDtypeStruct((h, b, t, s), out_dtype)
        w_spec = pl.BlockSpec((1, 1, tq, s), lambda bi, ti, hi: (hi, bi, ti, 0))
        scratch = []

    kernel = functools.partial(_attn_weights_kernel, mean_heads=mean_heads)
    return pl.pallas_call(
        kernel,
        out_shape=[jax.ShapeDtypeStruct((b, h, t, dh), q.dtype), w_shape],
        grid_spec=pltpu.PrefetchScalarGridSpec(
            num_scalar_prefetch=0,
            grid=grid,
            in_specs=[
                pl.BlockSpec((1, 1, tq, dh), lambda bi, ti, hi: (bi, hi, ti, 0)),
                pl.BlockSpec((1, 1, s, dh), lambda bi, ti, hi: (bi, hi, 0, 0)),
                pl.BlockSpec((1, 1, s, dh), lambda bi, ti, hi: (bi, hi, 0, 0)),
            ],
            out_specs=[
                pl.BlockSpec((1, 1, tq, dh), lambda bi, ti, hi: (bi, hi, ti, 0)),
                w_spec,
            ],
            scratch_shapes=scratch,
        ),
        compiler_params=_mosaic_params(("parallel", "parallel", "arbitrary")),
    )(q, k, v)


# ----------------------------------------------------------------------------
# Module wrapper (parameter setup + reshape glue in plain JAX)
# ----------------------------------------------------------------------------
class MultiheadAttentionPallas:
    def __init__(self, embed_dim, num_heads, key, kdim=None, vdim=None,
                 param_dtype=jnp.float32):
        self.embed_dim = embed_dim
        self.kdim = kdim if kdim is not None else embed_dim
        self.vdim = vdim if vdim is not None else embed_dim
        self.qkv_same_dim = self.kdim == embed_dim and self.vdim == embed_dim
        self.num_heads = num_heads
        self.head_dim = embed_dim // num_heads
        assert self.head_dim * num_heads == embed_dim
        self.scaling = self.head_dim ** (-0.5)
        self.param_dtype = param_dtype  # use bf16 in production for MXU rate / bandwidth

        ks = jax.random.split(key, 8)
        init = lambda kk, shape: (0.02 * jax.random.normal(kk, shape)).astype(jnp.float32)
        # PyTorch nn.Linear weight layout (out_features, in_features) — kept for reference().
        self.q_w = init(ks[0], (embed_dim, embed_dim))
        self.q_b = init(ks[1], (embed_dim,))
        self.k_w = init(ks[2], (embed_dim, self.kdim))
        self.k_b = init(ks[3], (embed_dim,))
        self.v_w = init(ks[4], (embed_dim, self.vdim))
        self.v_b = init(ks[5], (embed_dim,))
        self.o_w = init(ks[6], (embed_dim, embed_dim))
        self.o_b = init(ks[7], (embed_dim,))

        cast = lambda a: a.astype(param_dtype)
        # Pre-transposed (Din, Dout) weights, attention scaling folded into q-proj.
        self.q_wt = cast((self.q_w * self.scaling).T)
        self.q_b2 = cast((self.q_b * self.scaling).reshape(1, embed_dim))
        self.k_wt = cast(self.k_w.T)
        self.k_b2 = cast(self.k_b.reshape(1, embed_dim))
        self.v_wt = cast(self.v_w.T)
        self.v_b2 = cast(self.v_b.reshape(1, embed_dim))
        self.o_wt = cast(self.o_w.T)
        self.o_b2 = cast(self.o_b.reshape(1, embed_dim))
        if self.qkv_same_dim:
            # Fused QKV projection for self-attention: one HBM read of the activation.
            self.qkv_wt = jnp.concatenate([self.q_wt, self.k_wt, self.v_wt], axis=1)
            self.qkv_b2 = jnp.concatenate([self.q_b2, self.k_b2, self.v_b2], axis=1)
        # TODO(synk): key_padding_mask / attn_mask / rotary / LoRA / dropout / before_softmax
        # paths are not implemented (out of scope for this forward).

    def __call__(self, query, key, value, need_weights=True, need_head_weights=False):
        if need_head_weights:
            need_weights = True
        t, b, e = query.shape
        assert e == self.embed_dim
        h, dh = self.num_heads, self.head_dim

        if self.qkv_same_dim and (query is key) and (key is value):
            qkv = linear(query.reshape(t * b, e), self.qkv_wt, self.qkv_b2)  # (t*b, 3e)
            q, k, v = qkv[:, :e], qkv[:, e:2 * e], qkv[:, 2 * e:]
            s = t
        else:
            q = linear(query.reshape(t * b, e), self.q_wt, self.q_b2)   # scaling pre-folded
            k = linear(key.reshape(-1, self.kdim), self.k_wt, self.k_b2)
            v = linear(value.reshape(-1, self.vdim), self.v_wt, self.v_b2)
            s = k.shape[0] // b

        # (T, B, H, Dh) -> (B, H, T, Dh)
        # TODO(synk): fold these layout transposes into the attention BlockSpecs
        # (consume the reshape-only layout directly) to save ~4 HBM passes.
        q = q.reshape(t, b, h, dh).transpose(1, 2, 0, 3)
        k = k.reshape(s, b, h, dh).transpose(1, 2, 0, 3)
        v = v.reshape(s, b, h, dh).transpose(1, 2, 0, 3)

        if not need_weights:
            attn = flash_attention(q, k, v)     # S-tiled online softmax, no weights write
            attn_weights = None
        else:
            attn, attn_weights = attention_with_weights(
                q, k, v, mean_heads=not need_head_weights, out_dtype=query.dtype)
            # mean-heads: (B, T, S); per-head: already (H, B, T, S), no transpose needed.

        # (B, H, T, Dh) -> (T, B, E) -> out projection
        attn = attn.transpose(2, 0, 1, 3).reshape(t * b, e)
        attn = linear(attn, self.o_wt, self.o_b2).reshape(t, b, e)
        return attn, attn_weights

    # Pure-JAX reference (mirrors the PyTorch forward) for verification.
    def reference(self, query, key, value):
        t, b, e = query.shape
        h, dh = self.num_heads, self.head_dim
        q = query.reshape(t * b, e) @ self.q_w.T + self.q_b
        k = key.reshape(-1, self.kdim) @ self.k_w.T + self.k_b
        v = value.reshape(-1, self.vdim) @ self.v_w.T + self.v_b
        q = q * self.scaling
        q = q.reshape(t, b * h, dh).transpose(1, 0, 2)
        k = k.reshape(-1, b * h, dh).transpose(1, 0, 2)
        v = v.reshape(-1, b * h, dh).transpose(1, 0, 2)
        s = k.shape[1]
        aw = jnp.einsum('btd,bsd->bts', q, k)
        awf = jax.nn.softmax(aw.astype(jnp.float32), axis=-1)
        attn = jnp.einsum('bts,bsd->btd', awf, v)
        attn = attn.transpose(1, 0, 2).reshape(t, b, e)
        attn = attn.reshape(t * b, e) @ self.o_w.T + self.o_b
        attn = attn.reshape(t, b, e)
        weights = awf.reshape(b, h, t, s).transpose(1, 0, 2, 3).mean(axis=0)
        return attn, weights


if __name__ == "__main__":
    tgt_len, bsz, embed_dim, num_heads = 8, 2, 32, 4

    root = jax.random.PRNGKey(0)
    k_param, k_q, k_k, k_v = jax.random.split(root, 4)

    mha = MultiheadAttentionPallas(embed_dim, num_heads, k_param)

    # Time x Batch x Channel inputs
    query = jax.random.normal(k_q, (tgt_len, bsz, embed_dim), dtype=jnp.float32)
    key_in = jax.random.normal(k_k, (tgt_len, bsz, embed_dim), dtype=jnp.float32)
    value = jax.random.normal(k_v, (tgt_len, bsz, embed_dim), dtype=jnp.float32)

    ref_attn, ref_w = mha.reference(query, key_in, value)

    # 1) cross-attention, head-mean weights
    attn, attn_w = mha(query, key_in, value, need_weights=True)
    jax.block_until_ready((attn, attn_w))
    assert attn.shape == (tgt_len, bsz, embed_dim)
    assert attn_w.shape == (bsz, tgt_len, tgt_len)
    assert jnp.allclose(attn, ref_attn, atol=1e-4, rtol=1e-4)
    assert jnp.allclose(attn_w, ref_w, atol=1e-4, rtol=1e-4)

    # 2) cross-attention, per-head weights (written directly in (H, B, T, S))
    attn2, head_w = mha(query, key_in, value, need_head_weights=True)
    jax.block_until_ready((attn2, head_w))
    assert head_w.shape == (num_heads, bsz, tgt_len, tgt_len)
    assert jnp.allclose(attn2, ref_attn, atol=1e-4, rtol=1e-4)
    assert jnp.allclose(head_w.mean(axis=0), ref_w, atol=1e-4, rtol=1e-4)

    # 3) self-attention, fused QKV projection, weights path (exact softmax denom)
    ref_attn3, ref_w3 = mha.reference(query, query, query)
    attn3, self_w = mha(query, query, query, need_weights=True)
    jax.block_until_ready((attn3, self_w))
    assert jnp.allclose(attn3, ref_attn3, atol=1e-4, rtol=1e-4)
    assert jnp.allclose(self_w, ref_w3, atol=1e-4, rtol=1e-4)

    # 4) self-attention, fused QKV, flash (no-weights) path — approx reciprocal, looser tol
    attn4, no_w = mha(query, query, query, need_weights=False)
    jax.block_until_ready(attn4)
    assert no_w is None
    assert jnp.allclose(attn4, ref_attn3, atol=2e-3, rtol=2e-3)

    print("KERNEL_OK")
</pallas_src>

<mosaic_0001>
module attributes {stable_mosaic.version = 11 : i64} {
  func.func @_linear_kernel_noacc(%arg0: i32, %arg1: i32, %arg2: memref<16x32xf32, #tpu.memory_space<vmem>>, %arg3: memref<32x32xf32, #tpu.memory_space<vmem>>, %arg4: memref<1x32xf32, #tpu.memory_space<vmem>>, %arg5: memref<16x32xf32, #tpu.memory_space<vmem>>) attributes {dimension_semantics = [#tpu.dimension_semantics<parallel>, #tpu.dimension_semantics<parallel>], iteration_bounds = array<i64: 1, 1>, scalar_prefetch = 0 : i64, scratch_operands = 0 : i64, tpu.core_type = #tpu.core_type<tc>, window_params = [{transform_indices = @transform_0, window_bounds = array<i64: 16, 32>}, {transform_indices = @transform_1, window_bounds = array<i64: 32, 32>}, {transform_indices = @transform_2, window_bounds = array<i64: 1, 32>}, {transform_indices = @transform_3, window_bounds = array<i64: 16, 32>}]} {
    %c0 = arith.constant 0 : index
    %c0_0 = arith.constant 0 : index
    %0 = vector.load %arg2[%c0, %c0_0] : memref<16x32xf32, #tpu.memory_space<vmem>>, vector<16x32xf32>
    %c0_1 = arith.constant 0 : index
    %c0_2 = arith.constant 0 : index
    %1 = vector.load %arg3[%c0_1, %c0_2] : memref<32x32xf32, #tpu.memory_space<vmem>>, vector<32x32xf32>
    %cst = arith.constant dense<0.000000e+00> : vector<16x32xf32>
    %2 = tpu.matmul %0, %1, %cst {dimension_numbers = #tpu.dot_dimension_numbers<[1], [0], [0], [1], [0, 0, 1, 1], [], []>} : vector<16x32xf32>, vector<32x32xf32>, vector<16x32xf32> -> vector<16x32xf32>
    %c0_3 = arith.constant 0 : index
    %c0_4 = arith.constant 0 : index
    %3 = vector.load %arg4[%c0_3, %c0_4] : memref<1x32xf32, #tpu.memory_space<vmem>>, vector<1x32xf32>
    %4 = vector.broadcast %3 : vector<1x32xf32> to vector<16x32xf32>
    %5 = arith.addf %2, %4 : vector<16x32xf32>
    %c0_5 = arith.constant 0 : index
    %c0_6 = arith.constant 0 : index
    %6 = vector.load %arg5[%c0_5, %c0_6] : memref<16x32xf32, #tpu.memory_space<vmem>>, vector<16x32xf32>
    tpu.vector_store %arg5[%c0_5, %c0_6], %5 {strides = array<i32>} : memref<16x32xf32, #tpu.memory_space<vmem>>, vector<16x32xf32>,
    return
  }
  func.func @transform_0(%arg0: i32, %arg1: i32) -> (i32, i32) {
    %c0_i32 = arith.constant 0 : i32
    %c0_i32_0 = arith.constant 0 : i32
    return %arg0, %c0_i32 : i32, i32
  }
  func.func @transform_1(%arg0: i32, %arg1: i32) -> (i32, i32) {
    %c0_i32 = arith.constant 0 : i32
    %c0_i32_0 = arith.constant 0 : i32
    return %c0_i32, %arg1 : i32, i32
  }
  func.func @transform_2(%arg0: i32, %arg1: i32) -> (i32, i32) {
    %c0_i32 = arith.constant 0 : i32
    %c0_i32_0 = arith.constant 0 : i32
    return %c0_i32, %arg1 : i32, i32
  }
  func.func @transform_3(%arg0: i32, %arg1: i32) -> (i32, i32) {
    %c0_i32 = arith.constant 0 : i32
    return %arg0, %arg1 : i32, i32
  }
}

</mosaic_0001>

<llo_original>
// kernel: tpu_custom_call.1
$region0: #{tpu_custom_call.1}
  #allocation0 [shape = 'u32[]', space=smem, size = 0x4, offset = 0x4, fixed_abs, tag = 'smem constant byte address 0x4 - core index']
  #allocation1 [shape = 'u32[144,128]{1,0:T(1,128)}', space=vmem, size = 0x12000, scoped, tag = 'internal scratch']
  %s0 = inlined_call_operand.hbm [shape: f32[16,32], index: 0, kind: input, shape index: {}]
  %s1 = inlined_call_operand.hbm [shape: f32[32,32], index: 1, kind: input, shape index: {}]
  %s2 = inlined_call_operand.vmem [shape: f32[1,32], index: 2, kind: input, shape index: {}]
  %s3 = inlined_call_operand.hbm [shape: f32[16,32], index: 3, kind: output, shape index: {}]
  %s4 = sld [smem:[#allocation0]]
  $region30: #{tpu_custom_call.1} parent=0
    _
  %s6 = ssub.s32 1, %s4
  %s7 = scalar_select 0, %s6, %s4
  $region1: #{tpu_custom_call.1} parent=0
    #allocation2 [shape = 'u8[8192]{0}', space=vmem, size = 0x2000, scoped, tag = 'input window, operand 0, single buffered']
    #allocation3 [shape = 's32[1]{0}', space=sflag, size = 0x4, scoped, tag = 'scoped memory for tpu_custom_call.1']
    #allocation4 [shape = 's32[1]{0}', space=sflag, size = 0x4, scoped, tag = 'scoped memory for tpu_custom_call.1']
    #allocation5 [shape = 'u8[16384]{0}', space=vmem, size = 0x4000, scoped, tag = 'input window, operand 1, single buffered']
    #allocation6 [shape = 's32[1]{0}', space=sflag, size = 0x4, scoped, tag = 'scoped memory for tpu_custom_call.1']
    #allocation7 [shape = 'u8[8192]{0}', space=vmem, size = 0x2000, scoped, tag = 'output window, operand 0, single buffered']
    %8 = vsyncpa [#allocation3], 0
    %9 = vsyncpa [#allocation6], 0
    %10 = vsyncpa [#allocation4], 0
    // Predicated region
    $region2: #{tpu_custom_call.1} parent=1 // pred_check
      _
    $region3: #{tpu_custom_call.1} parent=1 // pred_check_branch
      %12 = sbr.rel (0) target = $region5
    $region4: #{tpu_custom_call.1} parent=1 // pred_region
      %s14 = ssub.s32 256, 256
      %15 = vsyncadd [#allocation3], %s14
      %s16 = sshll.u32 [#allocation2], 4
      %s17 = int_to_ptr.vmem [resolvable:$true] %s16
      %22 = dma.hbm_to_vmem [thread:$0]  %s0, 256, %s17, [#allocation3], 128, 128, 8
    $region5: #{tpu_custom_call.1} parent=1 // pred_fallthru
      _
    // Predicated region
    $region6: #{tpu_custom_call.1} parent=1 // pred_check
      _
    $region7: #{tpu_custom_call.1} parent=1 // pred_check_branch
      %24 = sbr.rel (0) target = $region9
    $region8: #{tpu_custom_call.1} parent=1 // pred_region
      %s26 = ssub.s32 512, 512
      %27 = vsyncadd [#allocation6], %s26
      %s28 = sshll.u32 [#allocation5], 4
      %s29 = int_to_ptr.vmem [resolvable:$true] %s28
      %34 = dma.hbm_to_vmem [thread:$0]  %s1, 512, %s29, [#allocation6], 128, 128, 8
    $region9: #{tpu_custom_call.1} parent=1 // pred_fallthru
      _
    // Predicated region
    $region10: #{tpu_custom_call.1} parent=1 // pred_check
      _
    $region11: #{tpu_custom_call.1} parent=1 // pred_check_branch
      %36 = sbr.rel (0) target = $region13
    $region12: #{tpu_custom_call.1} parent=1 // pred_region
      _
    $region13: #{tpu_custom_call.1} parent=1 // pred_fallthru
      _
    // Predicated region
    $region14: #{tpu_custom_call.1} parent=1 // pred_check
      _
    $region15: #{tpu_custom_call.1} parent=1 // pred_check_branch
      %38 = sbr.rel (0) target = $region17
    $region16: #{tpu_custom_call.1} parent=1 // pred_region
      %39 = dma.done [#allocation3], 256
    $region17: #{tpu_custom_call.1} parent=1 // pred_fallthru
      _
    // Predicated region
    $region18: #{tpu_custom_call.1} parent=1 // pred_check
      _
    $region19: #{tpu_custom_call.1} parent=1 // pred_check_branch
      %41 = sbr.rel (0) target = $region21
    $region20: #{tpu_custom_call.1} parent=1 // pred_region
      %42 = dma.done [#allocation6], 512
    $region21: #{tpu_custom_call.1} parent=1 // pred_fallthru
      _
    %v43 = vld [vmem:[#allocation2] sm:$0xff]
    %v44 = vld [vmem:[#allocation2 + $0x8] sm:$0xff]
    %v45 = vld [vmem:[#allocation5] sm:$0xff]
    %v46 = vld [vmem:[#allocation5 + $0x8] sm:$0xff]
    %v47 = vld [vmem:[#allocation5 + $0x10] sm:$0xff]
    %v48 = vld [vmem:[#allocation5 + $0x18] sm:$0xff]
    %v49 = vld [vmem:[%s2] sm:$0x1]
    %v51 = vlaneseq
    %v52 = vshrl.u32 %v51, 7
    %v53 = vsub.s32 0, %v52
    %v54 = vrot.slane %v49, %v53
    %vm56 = vcmask 261120
    %v58 = vsel %vm56, %v43, 0
    %v61 = vsel %vm56, %v44, 0
    %63 = vmatprep.subr.mxu0 0.0
    %64 = vmatpush1.msra.mxu0 0.0
    %65 = vmatprep.subr.mxu0 0.0
    %66 = vmatpush1.msra.mxu0 0.0
    %67 = vmatprep.subr.mxu0 0.0
    %68 = vmatpush1.msra.mxu0 0.0
    %69 = vmatprep.subr.mxu0 0.0
    %70 = vmatpush1.msra.mxu0 0.0
    %71 = vmatprep.subr.mxu0 0.0
    %72 = vmatpush1.msra.mxu0 0.0
    %73 = vmatprep.subr.mxu0 0.0
    %74 = vmatpush1.msra.mxu0 0.0
    %75 = vmatprep.subr.mxu0 0.0
    %76 = vmatpush1.msra.mxu0 0.0
    %77 = vmatprep.subr.mxu0 0.0
    %78 = vmatpush1.msra.mxu0 0.0
    %79 = vmatprep.subr.mxu0 0.0
    %80 = vmatpush1.msra.mxu0 0.0
    %81 = vmatprep.subr.mxu0 0.0
    %82 = vmatpush1.msra.mxu0 0.0
    %83 = vmatprep.subr.mxu0 0.0
    %84 = vmatpush1.msra.mxu0 0.0
    %85 = vmatprep.subr.mxu0 0.0
    %86 = vmatpush1.msra.mxu0 0.0
    %87 = vmatprep.subr.mxu0 0.0
    %88 = vmatpush1.msra.mxu0 %v48
    %89 = vmatprep.subr.mxu0 0.0
    %90 = vmatpush1.msra.mxu0 %v47
    %91 = vmatprep.subr.mxu0 0.0
    %92 = vmatpush1.msra.mxu0 %v46
    %93 = vmatprep.subr.mxu0 0.0
    %94 = vmatpush1.msra.mxu0 %v45
    %95 = vmatprep.subr.mxu0 0.0
    %96 = vmatpush2.msra.mxu0 0.0
    %97 = vmatprep.subr.mxu0 0.0
    %98 = vmatpush2.msra.mxu0 0.0
    %99 = vmatprep.subr.mxu0 0.0
    %100 = vmatpush2.msra.mxu0 0.0
    %101 = vmatprep.subr.mxu0 0.0
    %102 = vmatpush2.msra.mxu0 0.0
    %103 = vmatprep.subr.mxu0 0.0
    %104 = vmatpush2.msra.mxu0 0.0
    %105 = vmatprep.subr.mxu0 0.0
    %106 = vmatpush2.msra.mxu0 0.0
    %107 = vmatprep.subr.mxu0 0.0
    %108 = vmatpush2.msra.mxu0 0.0
    %109 = vmatprep.subr.mxu0 0.0
    %110 = vmatpush2.msra.mxu0 0.0
    %111 = vmatprep.subr.mxu0 0.0
    %112 = vmatpush2.msra.mxu0 0.0
    %113 = vmatprep.subr.mxu0 0.0
    %114 = vmatpush2.msra.mxu0 0.0
    %115 = vmatprep.subr.mxu0 0.0
    %116 = vmatpush2.msra.mxu0 0.0
    %117 = vmatprep.subr.mxu0 0.0
    %118 = vmatpush2.msra.mxu0 0.0
    %119 = vmatprep.subr.mxu0 0.0
    %120 = vmatpush2.msra.mxu0 0.0
    %121 = vmatprep.subr.mxu0 0.0
    %122 = vmatpush2.msra.mxu0 0.0
    %123 = vmatprep.subr.mxu0 0.0
    %124 = vmatpush2.msra.mxu0 0.0
    %125 = vmatprep.subr.mxu0 0.0
    %126 = vmatpush2.msra.mxu0 0.0
    %127 = vmatprep.mubr.f32.mxu0 0.0
    %128 = vmatmul.mubr.f32.gmra.mxu0 %v58
    %v129 = vpop.f32.mrf.mxu0
    %v130 = vadd.f32 %v54, %v129
    %v131 = vpop.f32.mrf.mxu0
    %132 = vmatprep.mubr.f32.mxu0 0.0
    %133 = vmatmul.mubr.f32.gmra.mxu0 %v61
    %v134 = vpop.f32.mrf.mxu0
    %v135 = vadd.f32 %v54, %v134
    %v136 = vpop.f32.mrf.mxu0
    %137 = vdwg.mxu0
    %138 = vst.msk [vmem:[#allocation7] sm:$0xff] %vm56, %v130
    %139 = vst.msk [vmem:[#allocation7 + $0x8] sm:$0xff] %vm56, %v135
    // Predicated region
    $region22: #{tpu_custom_call.1} parent=1 // pred_check
      _
    $region23: #{tpu_custom_call.1} parent=1 // pred_check_branch
      %141 = sbr.rel (0) target = $region25
    $region24: #{tpu_custom_call.1} parent=1 // pred_region
      %s143 = ssub.s32 256, 256
      %144 = vsyncadd [#allocation4], %s143
      %s145 = sshll.u32 [#allocation7], 4
      %s146 = int_to_ptr.vmem [resolvable:$true] %s145
      %151 = dma.vmem_to_hbm [thread:$0]  %s146, 256, %s3, [#allocation4], 128, 128, 8
    $region25: #{tpu_custom_call.1} parent=1 // pred_fallthru
      _
    // Predicated region
    $region26: #{tpu_custom_call.1} parent=1 // pred_check
      _
    $region27: #{tpu_custom_call.1} parent=1 // pred_check_branch
      %153 = sbr.rel (0) target = $region29
    $region28: #{tpu_custom_call.1} parent=1 // pred_region
      %154 = dma.done [#allocation4], 256
    $region29: #{tpu_custom_call.1} parent=1 // pred_fallthru
      _
    %155 = vsyncpa [#allocation3], 1
    %156 = vsyncpa [#allocation6], 1
    %157 = vsyncpa [#allocation4], 1

</llo_original>
